<compile_context>
chip_gen: v7x
topology: tpu7x:2x2x1
jax: 0.10.0
libtpu: 0.0.40
codegen_flags: <defaults>
</compile_context>

<pallas_src>
import math
import jax
import jax.numpy as jnp
from jax import lax
from jax.experimental import pallas as pl
from jax.experimental.pallas import tpu as pltpu


def _triple(v):
    if isinstance(v, (tuple, list)):
        assert len(v) == 3
        return tuple(int(x) for x in v)
    return (int(v), int(v), int(v))


def _round_up(x, m):
    return ((x + m - 1) // m) * m


def _vmem_capacity_bytes():
    # Per-generation VMEM capacity (128 MiB on v5e/v6e, 64 MiB per TC on v7x).
    # Fall back to the smallest (v7x) figure if the query is unavailable.
    try:
        return int(pltpu.get_tpu_info().vmem_capacity_bytes)
    except Exception:
        return 64 << 20


# ----------------------------------------------------------------------------- #
# Pallas kernel
# ----------------------------------------------------------------------------- #
def _make_dcn_kernel(Cout, K, T, H, W, tile_n, compute_dtype, per_axis_tent):
    N_in = T * H * W

    # TODO(synk): for large T*H*W, window S's rows to the input sub-range reachable
    # by each output tile (scalar-prefetched per-tile row offsets + dynamic index_map
    # on Y) instead of contracting densely over all N_in rows.
    def kernel(samp_ref, y_ref, b_ref, o_ref):
        # samp_ref: (K, 3, tile_n) f32   -- final sample coordinates per tap/axis
        # y_ref:    (K, Cout, N_in)      -- W_k @ X_b in compute_dtype (weights folded)
        # b_ref:    (Cout, 1) f32
        # o_ref:    (Cout, tile_n) f32

        # Everything that does not depend on the tap index is hoisted out of the loop.
        if per_axis_tent:
            grid_t = lax.broadcasted_iota(jnp.int32, (T, tile_n), 0).astype(jnp.float32)
            grid_h = lax.broadcasted_iota(jnp.int32, (H, tile_n), 0).astype(jnp.float32)
            grid_w = lax.broadcasted_iota(jnp.int32, (W, tile_n), 0).astype(jnp.float32)
        else:
            row = lax.broadcasted_iota(jnp.int32, (N_in, tile_n), 0)
            row_t = (row // (H * W)).astype(jnp.float32)
            row_h = ((row // W) % H).astype(jnp.float32)
            row_w = (row % W).astype(jnp.float32)

        def tap(k, acc):
            samp = samp_ref[k]                                    # (3, tile_n) f32
            ts, hs, ws = samp[0:1, :], samp[1:2, :], samp[2:3, :]
            if per_axis_tent:
                # Per-axis tent factors (small), combined via a broadcast outer
                # product: only the final multiplies run at (N_in, tile_n) size.
                wt = jnp.maximum(1.0 - jnp.abs(grid_t - ts), 0.0)   # (T, tile_n)
                wh = jnp.maximum(1.0 - jnp.abs(grid_h - hs), 0.0)   # (H, tile_n)
                ww = jnp.maximum(1.0 - jnp.abs(grid_w - ws), 0.0)   # (W, tile_n)
                S = (wt[:, None, None, :] * wh[None, :, None, :] * ww[None, None, :, :]
                     ).reshape(N_in, tile_n)
            else:
                wt = jnp.maximum(1.0 - jnp.abs(row_t - ts), 0.0)
                wh = jnp.maximum(1.0 - jnp.abs(row_h - hs), 0.0)
                ww = jnp.maximum(1.0 - jnp.abs(row_w - ws), 0.0)
                S = wt * wh * ww
            # gather + conv fused into one MXU GEMM (f32 accumulation).
            return acc + jnp.dot(y_ref[k], S.astype(compute_dtype),
                                 preferred_element_type=jnp.float32)

        acc = lax.fori_loop(0, K, tap, jnp.zeros((Cout, tile_n), jnp.float32))
        o_ref[...] = (acc + b_ref[...]).astype(o_ref.dtype)       # bias in the epilogue

    return kernel


def deform_conv3d_pallas(x, offset, weight, bias, stride, padding, dilation,
                         compute_dtype=jnp.bfloat16, max_tile_n=2048):
    B, Cin, T, H, W = (int(d) for d in x.shape)
    Cout = int(weight.shape[0])
    KT, KH, KW = (int(d) for d in weight.shape[2:])
    K = KT * KH * KW
    C_off = int(offset.shape[1])
    To, Ho, Wo = (int(d) for d in offset.shape[2:])
    assert C_off == 3 * K, f"offset channels {C_off} != 3*K = {3 * K}"
    N_in = T * H * W
    N_out = To * Ho * Wo
    csize = jnp.dtype(compute_dtype).itemsize

    # ---- TILE_N from the real per-generation VMEM budget --------------------------
    vmem_cap = _vmem_capacity_bytes()
    # Resident (TILE_N-independent) footprint: folded weights Y (double-buffered by
    # the implicit pipeline since its index_map only depends on b), bias, headroom.
    # TODO(synk): mark the Y/bias blocks pipeline_mode=pl.Buffered(1) (single-buffer
    # constant-index inputs) once needed; here the 2x factor is simply budgeted for.
    fixed = 2 * K * Cout * N_in * csize + 8 * Cout * 4 + (6 << 20)
    per_col = (3 * N_in * 4 + N_in * csize            # S product chain + compute-dtype copy
               + 2 * 3 * K * 4                        # streamed sample coords (x2 buffers)
               + 2 * Cout * 4                         # output block (x2 buffers)
               + 2 * Cout * 4                         # f32 accumulator carry
               + 2 * (T + H + W + T * H) * 4)         # per-axis factors / partial product
    budget = max(vmem_cap - fixed, 4 << 20)
    tile = max(128, min((budget // per_col) // 128 * 128,
                        int(max_tile_n), _round_up(N_out, 128)))

    # v7x has two TensorCores per chip: expose at least two parallel grid units.
    N_pad = _round_up(N_out, tile)
    num_tiles = N_pad // tile
    while B * num_tiles < 2 and tile > 128:
        tile = max(128, _round_up(tile // 2, 128))
        N_pad = _round_up(N_out, tile)
        num_tiles = N_pad // tile
    TILE_N = tile

    # ---- wrapper-side precompute ---------------------------------------------------
    x_flat = x.reshape(B, Cin, N_in).astype(jnp.float32)
    w_flat = weight.reshape(Cout, Cin, K).astype(jnp.float32)
    # Fold the conv weights into the input: Y[b, k] = W_k @ X_b  -> (B, K, Cout, N_in)
    y = jnp.einsum("oik,bin->bkon", w_flat, x_flat).astype(compute_dtype)

    # Final sample coordinates = offset + base output coordinate + tap displacement,
    # pre-folded here (the offset reshape already materializes this exact shape).
    off4 = offset.reshape(B, K, 3, N_out).astype(jnp.float32)      # channel 3k+j -> [k, j]
    tg, hg, wg = jnp.meshgrid(jnp.arange(To), jnp.arange(Ho), jnp.arange(Wo),
                              indexing="ij")
    base = jnp.stack([(tg * stride[0] - padding[0]).reshape(-1),
                      (hg * stride[1] - padding[1]).reshape(-1),
                      (wg * stride[2] - padding[2]).reshape(-1)],
                     axis=0).astype(jnp.float32)                   # (3, N_out)
    kk = jnp.arange(K)
    disp = jnp.stack([(kk // (KH * KW)) * dilation[0],
                      ((kk // KW) % KH) * dilation[1],
                      (kk % KW) * dilation[2]],
                     axis=-1).astype(jnp.float32)                  # (K, 3)
    samp = off4 + base[None, None, :, :] + disp[None, :, :, None]  # (B, K, 3, N_out)
    if N_pad != N_out:
        # Out-of-range coordinate -> all tent weights exactly 0 for padded columns.
        samp = jnp.pad(samp, ((0, 0), (0, 0), (0, 0), (0, N_pad - N_out)),
                       constant_values=-2.0)
    b_col = bias.reshape(Cout, 1).astype(jnp.float32)

    # The (T,H,W,TILE_N) -> (N_in,TILE_N) collapse is layout-preserving only when the
    # f32 sublane dim W is a multiple of 8; otherwise use the per-row tent build.
    per_axis_tent = (W % 8 == 0)
    kernel = _make_dcn_kernel(Cout, K, T, H, W, TILE_N, compute_dtype, per_axis_tent)

    vmem_limit = int(min(max(fixed + per_col * TILE_N, 32 << 20), vmem_cap))
    flops = 2 * B * num_tiles * K * Cout * N_in * TILE_N          # gather GEMMs dominate
    bytes_accessed = int(samp.size * 4 + y.size * csize + B * Cout * N_pad * 4 + Cout * 4)

    # TODO(synk): groups > 1 / deformable_groups > 1 are not implemented in the kernel.
    out_flat = pl.pallas_call(
        kernel,
        out_shape=jax.ShapeDtypeStruct((B, Cout, N_pad), jnp.float32),
        grid_spec=pltpu.PrefetchScalarGridSpec(
            num_scalar_prefetch=0,
            grid=(B, num_tiles),
            in_specs=[
                pl.BlockSpec((None, K, 3, TILE_N), lambda b, n: (b, 0, 0, n)),    # coords
                pl.BlockSpec((None, K, Cout, N_in), lambda b, n: (b, 0, 0, 0)),   # Y (per-b)
                pl.BlockSpec((Cout, 1), lambda b, n: (0, 0)),                     # bias
            ],
            out_specs=pl.BlockSpec((None, Cout, TILE_N), lambda b, n: (b, 0, n)),
        ),
        compiler_params=pltpu.CompilerParams(
            dimension_semantics=("parallel", "parallel"),
            vmem_limit_bytes=vmem_limit,
        ),
        cost_estimate=pl.CostEstimate(flops=flops, transcendentals=0,
                                      bytes_accessed=bytes_accessed),
    )(samp, y, b_col)

    return out_flat[:, :, :N_out].reshape(B, Cout, To, Ho, Wo)


# ----------------------------------------------------------------------------- #
# Module wrapper replicating DeformConv_d (forward semantics)
# ----------------------------------------------------------------------------- #
class DeformConvD:
    def __init__(self, in_channels, out_channels, kernel_size, stride, padding,
                 dimension="THW", dilation=1, groups=1, deformable_groups=1,
                 bias=True, key=None, compute_dtype=jnp.bfloat16):
        if in_channels % groups != 0 or out_channels % groups != 0:
            raise ValueError("channels must be divisible by groups")
        # TODO(synk): groups > 1 and deformable_groups > 1 are not implemented.
        assert groups == 1 and deformable_groups == 1

        self.in_channels = in_channels
        self.out_channels = out_channels
        self.kernel_size = _triple(kernel_size)
        self.stride = _triple(stride)
        self.padding = _triple(padding)
        self.dilation = _triple(dilation)
        self.dimension = dimension
        self.length = len(dimension)
        self.groups = groups
        self.deformable_groups = deformable_groups
        self.use_bias = bias
        self.compute_dtype = compute_dtype

        if key is None:
            key = jax.random.PRNGKey(0)
        KT, KH, KW = self.kernel_size
        fan_in = (in_channels // groups) * KT * KH * KW
        bound = 1.0 / math.sqrt(fan_in)  # kaiming_uniform_(a=sqrt(5)) bound
        kw_, kb_ = jax.random.split(key)
        self.weight = jax.random.uniform(
            kw_, (out_channels, in_channels // groups, KT, KH, KW),
            minval=-bound, maxval=bound, dtype=jnp.float32)
        if bias:
            self.bias = jax.random.uniform(
                kb_, (out_channels,), minval=-bound, maxval=bound, dtype=jnp.float32)
        else:
            self.bias = jnp.zeros((out_channels,), jnp.float32)

    def _build_offset(self, temp):
        # Reproduces the channel-rearrangement loops of DeformConv_d.forward.
        b, c, t, h, w = temp.shape
        n = self.deformable_groups * self.kernel_size[0] * self.kernel_size[1] * self.kernel_size[2]
        dT = "T" in self.dimension
        dH = "H" in self.dimension
        dW = "W" in self.dimension
        if self.length == 2:
            a = temp.reshape(b, n, 2, t, h, w)
            z = jnp.zeros((b, n, 1, t, h, w), temp.dtype)
            if not dT:
                off = jnp.concatenate([z, a[:, :, 0:1], a[:, :, 1:2]], axis=2)
            elif not dH:
                off = jnp.concatenate([a[:, :, 0:1], z, a[:, :, 1:2]], axis=2)
            else:  # not dW
                off = jnp.concatenate([a[:, :, 0:1], a[:, :, 1:2], z], axis=2)
        elif self.length == 1:
            a = temp.reshape(b, n, 1, t, h, w)
            z = jnp.zeros_like(a)
            if dT:
                off = jnp.concatenate([a, z, z], axis=2)
            elif dH:
                off = jnp.concatenate([z, a, z], axis=2)
            else:
                off = jnp.concatenate([z, z, a], axis=2)
        else:
            raise NotImplementedError("dimension must have length 1 or 2 (as in the torch module)")
        return off.reshape(b, 3 * n, t, h, w)

    def __call__(self, input, temp):
        offset = self._build_offset(temp)
        return deform_conv3d_pallas(input, offset, self.weight, self.bias,
                                    self.stride, self.padding, self.dilation,
                                    compute_dtype=self.compute_dtype)


# ----------------------------------------------------------------------------- #
# Pure-JAX reference (8-corner clip + validity-mask trilinear) for correctness
# ----------------------------------------------------------------------------- #
def deform_conv3d_ref(x, offset, weight, bias, stride, padding, dilation):
    B, Cin, T, H, W = x.shape
    Cout, _, KT, KH, KW = weight.shape
    K = KT * KH * KW
    To, Ho, Wo = offset.shape[2:]
    N_out = To * Ho * Wo

    x_flat = x.reshape(B, Cin, T * H * W)
    off = offset.reshape(B, 3 * K, N_out)
    tg, hg, wg = jnp.meshgrid(jnp.arange(To), jnp.arange(Ho), jnp.arange(Wo), indexing="ij")
    base_t = (tg * stride[0] - padding[0]).astype(jnp.float32).reshape(-1)
    base_h = (hg * stride[1] - padding[1]).astype(jnp.float32).reshape(-1)
    base_w = (wg * stride[2] - padding[2]).astype(jnp.float32).reshape(-1)

    cols = []
    for k in range(K):
        kt, kh, kw = k // (KH * KW), (k // KW) % KH, k % KW
        ts = base_t + kt * dilation[0] + off[:, 3 * k + 0]
        hs = base_h + kh * dilation[1] + off[:, 3 * k + 1]
        ws = base_w + kw * dilation[2] + off[:, 3 * k + 2]
        t0 = jnp.floor(ts)
        h0 = jnp.floor(hs)
        w0 = jnp.floor(ws)
        ft, fh, fw = ts - t0, hs - h0, ws - w0
        t0i, h0i, w0i = t0.astype(jnp.int32), h0.astype(jnp.int32), w0.astype(jnp.int32)
        val = jnp.zeros((B, Cin, N_out), jnp.float32)
        for dt in (0, 1):
            for dh in (0, 1):
                for dw in (0, 1):
                    ct, ch, cw = t0i + dt, h0i + dh, w0i + dw
                    wcorner = ((ft if dt else 1.0 - ft) *
                               (fh if dh else 1.0 - fh) *
                               (fw if dw else 1.0 - fw))
                    valid = ((ct >= 0) & (ct < T) & (ch >= 0) & (ch < H) &
                             (cw >= 0) & (cw < W))
                    flat = (jnp.clip(ct, 0, T - 1) * (H * W) +
                            jnp.clip(ch, 0, H - 1) * W +
                            jnp.clip(cw, 0, W - 1))
                    g = jnp.take_along_axis(
                        x_flat,
                        jnp.broadcast_to(flat[:, None, :], (B, Cin, N_out)),
                        axis=2)
                    val = val + jnp.where(valid, wcorner, 0.0)[:, None, :] * g
        cols.append(val)
    col = jnp.stack(cols, axis=2)  # (B, Cin, K, N_out)
    out = jnp.einsum("oik,bikn->bon", weight.reshape(Cout, Cin, K), col) + bias[None, :, None]
    return out.reshape(B, Cout, To, Ho, Wo)


# ----------------------------------------------------------------------------- #
if __name__ == "__main__":
    key = jax.random.PRNGKey(0)
    k_x, k_t, k_p = jax.random.split(key, 3)

    B, Cin, T, H, W = 2, 4, 4, 8, 8
    Cout = 8
    conv = DeformConvD(Cin, Cout, kernel_size=3, stride=1, padding=1,
                       dimension="HW", key=k_p)          # default bf16 MXU path

    x = jax.random.normal(k_x, (B, Cin, T, H, W), jnp.float32)
    # temp carries 2 offset channels per kernel tap (H and W) for dimension='HW'
    temp = 0.5 * jax.random.normal(k_t, (B, 2 * 27, T, H, W), jnp.float32)

    out = conv(x, temp)
    out = jax.block_until_ready(out)
    assert out.shape == (B, Cout, T, H, W)

    # Correctness vs. a pure-JAX 8-corner reference.
    offset = conv._build_offset(temp)
    ref = deform_conv3d_ref(x, offset, conv.weight, conv.bias,
                            conv.stride, conv.padding, conv.dilation)

    # bf16 gather-GEMM operands: tolerance sized for ~2^-9 relative rounding on the
    # 27*8 accumulated corner products per output (outputs are O(1) here).
    err_bf16 = float(jnp.max(jnp.abs(out - ref)))
    assert err_bf16 < 5e-2, f"bf16-path max abs error {err_bf16}"

    # Exact (f32) path must match tightly.
    out_f32 = deform_conv3d_pallas(x, offset, conv.weight, conv.bias,
                                   conv.stride, conv.padding, conv.dilation,
                                   compute_dtype=jnp.float32)
    out_f32 = jax.block_until_ready(out_f32)
    err_f32 = float(jnp.max(jnp.abs(out_f32 - ref)))
    assert err_f32 < 1e-3, f"f32-path max abs error {err_f32}"

    print("KERNEL_OK")
</pallas_src>

<mosaic_0001>
module attributes {stable_mosaic.version = 11 : i64} {
  func.func @kernel(%arg0: i32, %arg1: i32, %arg2: memref<1x27x3x256xf32, #tpu.memory_space<vmem>>, %arg3: memref<1x27x8x256xbf16, #tpu.memory_space<vmem>>, %arg4: memref<8x1xf32, #tpu.memory_space<vmem>>, %arg5: memref<1x8x256xf32, #tpu.memory_space<vmem>>) attributes {dimension_semantics = [#tpu.dimension_semantics<parallel>, #tpu.dimension_semantics<parallel>], iteration_bounds = array<i64: 2, 1>, scalar_prefetch = 0 : i64, scratch_operands = 0 : i64, tpu.core_type = #tpu.core_type<tc>, window_params = [{transform_indices = @transform_0, window_bounds = array<i64: 1, 27, 3, 256>}, {transform_indices = @transform_1, window_bounds = array<i64: 1, 27, 8, 256>}, {pipeline_mode = #tpu.pipeline_mode<synchronous>, transform_indices = @transform_2, window_bounds = array<i64: 8, 1>}, {transform_indices = @transform_3, window_bounds = array<i64: 1, 8, 256>}]} {
    %0 = tpu.iota {dimensions = array<i32: 0>} : vector<4x256xi32>
    %1 = arith.sitofp %0 : vector<4x256xi32> to vector<4x256xf32>
    %2 = tpu.iota {dimensions = array<i32: 0>} : vector<8x256xi32>
    %3 = arith.sitofp %2 : vector<8x256xi32> to vector<8x256xf32>
    %4 = tpu.iota {dimensions = array<i32: 0>} : vector<8x256xi32>
    %5 = arith.sitofp %4 : vector<8x256xi32> to vector<8x256xf32>
    %cst = arith.constant 0.000000e+00 : f32
    %6 = vector.broadcast %cst : f32 to vector<8x256xf32>
    %c0_i32 = arith.constant 0 : i32
    %c27_i32 = arith.constant 27 : i32
    %7 = arith.addi %c0_i32, %c27_i32 : i32
    %c1_i32 = arith.constant 1 : i32
    %8 = scf.for %arg6 = %c0_i32 to %7 step %c1_i32 iter_args(%arg7 = %6) -> (vector<8x256xf32>)  : i32 {
      %c0_5 = arith.constant 0 : index
      %15 = arith.index_cast %arg6 : i32 to index
      %c0_6 = arith.constant 0 : index
      %c0_7 = arith.constant 0 : index
      %16 = vector.load %arg2[%c0_5, %15, %c0_6, %c0_7] : memref<1x27x3x256xf32, #tpu.memory_space<vmem>>, vector<1x1x3x256xf32>
      %17 = vector.shape_cast %16 : vector<1x1x3x256xf32> to vector<3x256xf32>
      %18 = vector.extract_strided_slice %17 {offsets = [0, 0], sizes = [1, 256], strides = [1, 1]} : vector<3x256xf32> to vector<1x256xf32>
      %19 = vector.extract_strided_slice %17 {offsets = [1, 0], sizes = [1, 256], strides = [1, 1]} : vector<3x256xf32> to vector<1x256xf32>
      %20 = vector.extract_strided_slice %17 {offsets = [2, 0], sizes = [1, 256], strides = [1, 1]} : vector<3x256xf32> to vector<1x256xf32>
      %21 = vector.broadcast %18 : vector<1x256xf32> to vector<4x256xf32>
      %22 = arith.subf %1, %21 : vector<4x256xf32>
      %23 = math.absf %22 : vector<4x256xf32>
      %cst_8 = arith.constant 1.000000e+00 : f32
      %24 = vector.broadcast %cst_8 : f32 to vector<4x256xf32>
      %25 = arith.subf %24, %23 : vector<4x256xf32>
      %cst_9 = arith.constant 0.000000e+00 : f32
      %26 = vector.broadcast %cst_9 : f32 to vector<4x256xf32>
      %27 = arith.maximumf %25, %26 : vector<4x256xf32>
      %28 = vector.broadcast %19 : vector<1x256xf32> to vector<8x256xf32>
      %29 = arith.subf %3, %28 : vector<8x256xf32>
      %30 = math.absf %29 : vector<8x256xf32>
      %cst_10 = arith.constant 1.000000e+00 : f32
      %31 = vector.broadcast %cst_10 : f32 to vector<8x256xf32>
      %32 = arith.subf %31, %30 : vector<8x256xf32>
      %cst_11 = arith.constant 0.000000e+00 : f32
      %33 = vector.broadcast %cst_11 : f32 to vector<8x256xf32>
      %34 = arith.maximumf %32, %33 : vector<8x256xf32>
      %35 = vector.broadcast %20 : vector<1x256xf32> to vector<8x256xf32>
      %36 = arith.subf %5, %35 : vector<8x256xf32>
      %37 = math.absf %36 : vector<8x256xf32>
      %cst_12 = arith.constant 1.000000e+00 : f32
      %38 = vector.broadcast %cst_12 : f32 to vector<8x256xf32>
      %39 = arith.subf %38, %37 : vector<8x256xf32>
      %cst_13 = arith.constant 0.000000e+00 : f32
      %40 = vector.broadcast %cst_13 : f32 to vector<8x256xf32>
      %41 = arith.maximumf %39, %40 : vector<8x256xf32>
      %42 = vector.shape_cast %27 : vector<4x256xf32> to vector<4x1x1x256xf32>
      %43 = vector.shape_cast %34 : vector<8x256xf32> to vector<1x8x1x256xf32>
      %44 = vector.broadcast %42 : vector<4x1x1x256xf32> to vector<4x8x1x256xf32>
      %45 = vector.broadcast %43 : vector<1x8x1x256xf32> to vector<4x8x1x256xf32>
      %46 = arith.mulf %44, %45 : vector<4x8x1x256xf32>
      %47 = vector.shape_cast %41 : vector<8x256xf32> to vector<1x1x8x256xf32>
      %48 = vector.broadcast %46 : vector<4x8x1x256xf32> to vector<4x8x8x256xf32>
      %49 = vector.broadcast %47 : vector<1x1x8x256xf32> to vector<4x8x8x256xf32>
      %50 = arith.mulf %48, %49 : vector<4x8x8x256xf32>
      %51 = vector.shape_cast %50 : vector<4x8x8x256xf32> to vector<256x256xf32>
      %c0_14 = arith.constant 0 : index
      %52 = arith.index_cast %arg6 : i32 to index
      %c0_15 = arith.constant 0 : index
      %c0_16 = arith.constant 0 : index
      %53 = vector.load %arg3[%c0_14, %52, %c0_15, %c0_16] : memref<1x27x8x256xbf16, #tpu.memory_space<vmem>>, vector<1x1x8x256xbf16>
      %54 = vector.shape_cast %53 : vector<1x1x8x256xbf16> to vector<8x256xbf16>
      %55 = arith.truncf %51 : vector<256x256xf32> to vector<256x256xbf16>
      %cst_17 = arith.constant dense<0.000000e+00> : vector<8x256xf32>
      %56 = tpu.matmul %54, %55, %cst_17 {dimension_numbers = #tpu.dot_dimension_numbers<[1], [0], [0], [1], [0, 0, 1, 1], [], []>} : vector<8x256xbf16>, vector<256x256xbf16>, vector<8x256xf32> -> vector<8x256xf32>
      %57 = arith.addf %arg7, %56 : vector<8x256xf32>
      scf.yield %57 : vector<8x256xf32>
    }
    %c27_i32_0 = arith.constant 27 : i32
    %c0 = arith.constant 0 : index
    %c0_1 = arith.constant 0 : index
    %9 = vector.load %arg4[%c0, %c0_1] : memref<8x1xf32, #tpu.memory_space<vmem>>, vector<8x1xf32>
    %10 = vector.broadcast %9 : vector<8x1xf32> to vector<8x256xf32>
    %11 = arith.addf %8, %10 : vector<8x256xf32>
    %c0_2 = arith.constant 0 : index
    %c0_3 = arith.constant 0 : index
    %c0_4 = arith.constant 0 : index
    %12 = vector.load %arg5[%c0_2, %c0_3, %c0_4] : memref<1x8x256xf32, #tpu.memory_space<vmem>>, vector<1x8x256xf32>
    %13 = vector.shape_cast %12 : vector<1x8x256xf32> to vector<8x256xf32>
    %14 = vector.shape_cast %11 : vector<8x256xf32> to vector<1x8x256xf32>
    tpu.vector_store %arg5[%c0_2, %c0_3, %c0_4], %14 {strides = array<i32>} : memref<1x8x256xf32, #tpu.memory_space<vmem>>, vector<1x8x256xf32>,
    return
  }
  func.func @transform_0(%arg0: i32, %arg1: i32) -> (i32, i32, i32, i32) {
    %c0_i32 = arith.constant 0 : i32
    %c0_i32_0 = arith.constant 0 : i32
    %c0_i32_1 = arith.constant 0 : i32
    return %arg0, %c0_i32, %c0_i32_0, %arg1 : i32, i32, i32, i32
  }
  func.func @transform_1(%arg0: i32, %arg1: i32) -> (i32, i32, i32, i32) {
    %c0_i32 = arith.constant 0 : i32
    %c0_i32_0 = arith.constant 0 : i32
    %c0_i32_1 = arith.constant 0 : i32
    %c0_i32_2 = arith.constant 0 : i32
    return %arg0, %c0_i32, %c0_i32_0, %c0_i32_1 : i32, i32, i32, i32
  }
  func.func @transform_2(%arg0: i32, %arg1: i32) -> (i32, i32) {
    %c0_i32 = arith.constant 0 : i32
    %c0_i32_0 = arith.constant 0 : i32
    %c0_i32_1 = arith.constant 0 : i32
    return %c0_i32, %c0_i32_0 : i32, i32
  }
  func.func @transform_3(%arg0: i32, %arg1: i32) -> (i32, i32, i32) {
    %c0_i32 = arith.constant 0 : i32
    %c0_i32_0 = arith.constant 0 : i32
    return %arg0, %c0_i32, %arg1 : i32, i32, i32
  }
}

</mosaic_0001>

<llo_original>
// kernel: tpu_custom_call.1
$region0: #{tpu_custom_call.1}
  #allocation0 [shape = 'u32[]', space=smem, size = 0x4, offset = 0x4, fixed_abs, tag = 'smem constant byte address 0x4 - core index']
  #allocation1 [shape = 'u32[144,128]{1,0:T(1,128)}', space=vmem, size = 0x12000, scoped, tag = 'internal scratch']
  %s0 = inlined_call_operand.vmem [shape: f32[2,27,3,256], index: 0, kind: input, shape index: {}]
  %s1 = inlined_call_operand.vmem [shape: bf16[2,27,8,256], index: 1, kind: input, shape index: {}]
  %s2 = inlined_call_operand.vmem [shape: f32[8,1], index: 2, kind: input, shape index: {}]
  %s3 = inlined_call_operand.hbm [shape: f32[2,8,256], index: 3, kind: output, shape index: {}]
  %s4 = sld [smem:[#allocation0]]
  $region52: #{tpu_custom_call.1} parent=0
    _
  %s6 = ssub.s32 1, %s4
  %s7 = scalar_select 0, %s6, %s4
  $region1: #{tpu_custom_call.1} parent=0
    #allocation2 [shape = 'u8[16384]{0}', space=vmem, size = 0x4000, scoped, tag = 'output window, operand 0']
    #allocation3 [shape = 's32[2]{0}', space=sflag, size = 0x8, scoped, tag = 'scoped memory for tpu_custom_call.1']
    %8 = vsyncpa [#allocation3], 0
    %s9 = scalar_lea.sflag [#allocation3], 1
    %10 = vsyncpa %s9, 0
    loop: start=0, step=1, limit=4
    $region2: #{tpu_custom_call.1} parent=1 // loop_pre_header
      _
    $region3: #{tpu_custom_call.1} parent=1 // loop_header
      %s12 = sphi 0, %s16
      %p13 = scmp.ge.s32.totalorder %s12, 4
      %s19 = sphi 0, %s31
      %s20 = sphi 0, %s27
      %s21 = sphi 0, %s19
      %s22 = sphi 0, %s20
      %s23 = sphi 0, %s21
      %s24 = sphi 0, %s22
      %s36 = sphi 0, %s38
      %s39 = sphi 0, %s36
      %s40 = sphi 0, %s39
      %s56 = sphi 0, %s40
      %s62 = sphi 0, %s64
      %s65 = sphi 0, %s62
      %s66 = sphi 0, %s65
      %s82 = sphi 0, %s66
      %s86 = sphi 0, %s86
      %s88 = sphi 0, %s86
      %s89 = sphi 0, %s88
      %s103 = sphi 0, %s89
      %s111 = sphi 0, %s113
      %s114 = sphi 0, %s111
      %s115 = sphi 0, %s114
      %s131 = sphi 0, %s115
    $region4: #{tpu_custom_call.1} parent=1 // loop_header_branch
      %15 = sbr.rel (%p13) target = $region8
    $region5: #{tpu_custom_call.1} parent=1 // loop_body
      %s17 = ssub.s32 %s12, 1
      %s18 = ssub.s32 %s12, 2
      %s25 = sadd.s32 1, %s20
      %p26 = scmp.ge.s32.totalorder %s25, 1
      %s27 = scalar_select %p26, 0, %s25
      %s28 = sadd.s32 1, %s19
      %s29 = scalar_select %p26, %s28, %s19
      %p30 = scmp.ge.s32.totalorder %s29, 2
      %s31 = scalar_select %p30, 0, %s29
      %s32 = ssub.s32 %s19, %s31
      %s33 = ssub.s32 %s20, %s27
      %s34 = sor.u32 %s32, %s33
      %p35 = scmp.eq.s32.totalorder %s34, 0
      %s37 = sadd.s32 %s36, 1
      %s38 = scalar_select %p35, %s36, %s37
      %p41 = pneg %p35
      %p42 = scmp.eq.s32.totalorder %s12, 1
      %p43 = por %p41, %p42
      %p44 = scmp.ne.s32.totalorder %s36, %s39
      %p45 = scmp.eq.s32.totalorder %s12, 0
      %p46 = por %p44, %p45
      %p47 = scmp.ne.s32.totalorder %s36, %s39
      %p48 = scmp.eq.s32.totalorder %s17, 1
      %p49 = por %p47, %p48
      %p50 = scmp.ne.s32.totalorder %s39, %s40
      %p51 = scmp.eq.s32.totalorder %s17, 0
      %p52 = por %p50, %p51
      %p53 = scmp.ne.s32.totalorder %s39, %s40
      %p54 = scmp.eq.s32.totalorder %s18, 1
      %p55 = por %p53, %p54
      %p57 = scmp.ne.s32.totalorder %s40, %s56
      %p58 = scmp.eq.s32.totalorder %s18, 0
      %p59 = por %p57, %p58
      %s60 = ssub.s32 %s19, %s31
      %p61 = scmp.eq.s32.totalorder %s60, 0
      %s63 = sadd.s32 %s62, 1
      %s64 = scalar_select %p61, %s62, %s63
      %p67 = pneg %p61
      %p68 = scmp.eq.s32.totalorder %s12, 1
      %p69 = por %p67, %p68
      %p70 = scmp.ne.s32.totalorder %s62, %s65
      %p71 = scmp.eq.s32.totalorder %s12, 0
      %p72 = por %p70, %p71
      %p73 = scmp.ne.s32.totalorder %s62, %s65
      %p74 = scmp.eq.s32.totalorder %s17, 1
      %p75 = por %p73, %p74
      %p76 = scmp.ne.s32.totalorder %s65, %s66
      %p77 = scmp.eq.s32.totalorder %s17, 0
      %p78 = por %p76, %p77
      %p79 = scmp.ne.s32.totalorder %s65, %s66
      %p80 = scmp.eq.s32.totalorder %s18, 1
      %p81 = por %p79, %p80
      %p83 = scmp.ne.s32.totalorder %s66, %s82
      %p84 = scmp.eq.s32.totalorder %s18, 0
      %p85 = por %p83, %p84
      %s87 = sadd.s32 %s86, 1
      %p90 = scmp.eq.s32.totalorder %s12, 1
      %p91 = scmp.ne.s32.totalorder %s86, %s88
      %p92 = scmp.eq.s32.totalorder %s12, 0
      %p93 = por %p91, %p92
      %p94 = scmp.ne.s32.totalorder %s86, %s88
      %p95 = scmp.eq.s32.totalorder %s17, 1
      %p96 = por %p94, %p95
      %p97 = scmp.ne.s32.totalorder %s88, %s89
      %p98 = scmp.eq.s32.totalorder %s17, 0
      %p99 = por %p97, %p98
      %p100 = scmp.ne.s32.totalorder %s88, %s89
      %p101 = scmp.eq.s32.totalorder %s18, 1
      %p102 = por %p100, %p101
      %p104 = scmp.ne.s32.totalorder %s89, %s103
      %p105 = scmp.eq.s32.totalorder %s18, 0
      %p106 = por %p104, %p105
      %s107 = ssub.s32 %s19, %s31
      %s108 = ssub.s32 %s20, %s27
      %s109 = sor.u32 %s107, %s108
      %p110 = scmp.eq.s32.totalorder %s109, 0
      %s112 = sadd.s32 %s111, 1
      %s113 = scalar_select %p110, %s111, %s112
      %p116 = pneg %p110
      %p117 = scmp.eq.s32.totalorder %s12, 1
      %p118 = por %p116, %p117
      %p119 = scmp.ne.s32.totalorder %s111, %s114
      %p120 = scmp.eq.s32.totalorder %s12, 0
      %p121 = por %p119, %p120
      %p122 = scmp.ne.s32.totalorder %s111, %s114
      %p123 = scmp.eq.s32.totalorder %s17, 1
      %p124 = por %p122, %p123
      %p125 = scmp.ne.s32.totalorder %s114, %s115
      %p126 = scmp.eq.s32.totalorder %s17, 0
      %p127 = por %p125, %p126
      %p128 = scmp.ne.s32.totalorder %s114, %s115
      %p129 = scmp.eq.s32.totalorder %s18, 1
      %p130 = por %p128, %p129
      %p132 = scmp.ne.s32.totalorder %s115, %s131
      %p133 = scmp.eq.s32.totalorder %s18, 0
      %p134 = por %p132, %p133
      %p135 = scmp.le.s32.totalorder 1, %s12
      %p136 = scmp.lt.s32.totalorder %s12, 3
      %p137 = pnand %p135, %p136
      %p138 = pneg %p137
      // Predicated region
      $region9: #{tpu_custom_call.1} parent=5 // pred_check
        _
      $region10: #{tpu_custom_call.1} parent=5 // pred_check_branch
        %140 = sbr.rel (%p137) target = $region12
      $region11: #{tpu_custom_call.1} parent=5 // pred_region
        %s141 = ssub.s32 %s12, 1
        // Predicated region
        $region13: #{tpu_custom_call.1} parent=11 // pred_check
          %p142 = pneg %p99
        $region14: #{tpu_custom_call.1} parent=11 // pred_check_branch
          %144 = sbr.rel (%p142) target = $region16
        $region15: #{tpu_custom_call.1} parent=11 // pred_region
          _
        $region16: #{tpu_custom_call.1} parent=11 // pred_fallthru
          _
      $region12: #{tpu_custom_call.1} parent=5 // pred_fallthru
        _
      %p145 = scmp.lt.s32.totalorder %s12, 2
      // Predicated region
      $region17: #{tpu_custom_call.1} parent=5 // pred_check
        %p146 = pneg %p145
      $region18: #{tpu_custom_call.1} parent=5 // pred_check_branch
        %148 = sbr.rel (%p146) target = $region20
      $region19: #{tpu_custom_call.1} parent=5 // pred_region
        // Predicated region
        $region21: #{tpu_custom_call.1} parent=19 // pred_check
          %p149 = pneg %p46
        $region22: #{tpu_custom_call.1} parent=19 // pred_check_branch
          %151 = sbr.rel (%p149) target = $region24
        $region23: #{tpu_custom_call.1} parent=19 // pred_region
          %s152 = smul.u32 2, %s20
          %p153 = scmp.lt.s32.totalorder %s19, 1
          %s154 = scalar_select %p153, %s19, 1
          %p155 = scmp.lt.s32.totalorder %s152, 1
          %s156 = scalar_select %p155, %s152, 1
          %s157 = smul.addr %s154, 54
          %s158 = sadd.s32 %s156, %s157
          %s159 = smul.addr %s158, 4
          %s160 = scalar_lea.vmem %s0, %s159
          %s161 = smul.u32 2, %s20
        $region24: #{tpu_custom_call.1} parent=19 // pred_fallthru
          _
        // Predicated region
        $region25: #{tpu_custom_call.1} parent=19 // pred_check
          %p162 = pneg %p72
        $region26: #{tpu_custom_call.1} parent=19 // pred_check_branch
          %164 = sbr.rel (%p162) target = $region28
        $region27: #{tpu_custom_call.1} parent=19 // pred_region
          %p165 = scmp.lt.s32.totalorder %s19, 1
          %s166 = scalar_select %p165, %s19, 1
          %s167 = smul.addr %s166, 54
          %s168 = smul.addr %s167, 4
          %s169 = scalar_lea.vmem %s1, %s168
        $region28: #{tpu_custom_call.1} parent=19 // pred_fallthru
          _
      $region20: #{tpu_custom_call.1} parent=5 // pred_fallthru
        _
      %p170 = scmp.le.s32.totalorder 1, %s12
      %p171 = scmp.lt.s32.totalorder %s12, 3
      %p172 = pnand %p170, %p171
      %p173 = pneg %p172
      // Predicated region
      $region29: #{tpu_custom_call.1} parent=5 // pred_check
        _
      $region30: #{tpu_custom_call.1} parent=5 // pred_check_branch
        %175 = sbr.rel (%p172) target = $region32
      $region31: #{tpu_custom_call.1} parent=5 // pred_region
        %s176 = ssub.s32 %s12, 1
        %s177 = smul.u32 2, %s22
        %p178 = scmp.lt.s32.totalorder %s21, 1
        %s179 = scalar_select %p178, %s21, 1
        %p180 = scmp.lt.s32.totalorder %s177, 1
        %s181 = scalar_select %p180, %s177, 1
        %s182 = smul.addr %s179, 54
        %s183 = sadd.s32 %s181, %s182
        %s184 = smul.addr %s183, 4
        %s185 = scalar_lea.vmem %s0, %s184
        %p186 = pneg %p52
        %p187 = pneg %p49
        %p188 = scmp.lt.s32.totalorder %s21, 1
        %s189 = scalar_select %p188, %s21, 1
        %s190 = smul.addr %s189, 54
        %s191 = smul.addr %s190, 4
        %s192 = scalar_lea.vmem %s1, %s191
        %p193 = pneg %p78
        %p194 = pneg %p75
        %p195 = pneg %p99
        %p196 = pneg %p96
        %p197 = pneg %p127
        %p198 = pneg %p124
        %s199 = sand.u32 %s114, 1
        %s200 = scalar_lea.sflag [#allocation3], %s199
        %s201 = sand.u32 %s114, 1
        %s202 = smul.addr %s201, 16
        %s203 = scalar_lea.vmem [#allocation2], %s202
        %s204 = smul.u32 2, %s22
        %p205 = scmp.lt.s32.totalorder %s21, 1
        %s206 = scalar_select %p205, %s21, 1
        %p207 = scmp.lt.s32.totalorder %s204, 1
        %s208 = scalar_select %p207, %s204, 1
        %s209 = smul.addr %s206, 54
        %s210 = sadd.s32 %s208, %s209
        %s211 = smul.addr %s210, 4
        %s212 = scalar_lea.vmem %s0, %s211
        %s213 = smul.u32 2, %s22
        %p214 = scmp.lt.s32.totalorder %s21, 1
        %s215 = scalar_select %p214, %s21, 1
        %s216 = smul.addr %s215, 54
        %s217 = smul.addr %s216, 4
        %s218 = scalar_lea.vmem %s1, %s217
        %s219 = smul.u32 2, %s22
        %v220 = vlaneseq
        %v221 = vshrl.u32 %v220, 7
        %v222 = vcvt.s32.f32 %v221
        loop: start=0, step=1, limit=27
        $region33: #{tpu_custom_call.1} parent=31 // loop_pre_header
          _
        $region34: #{tpu_custom_call.1} parent=31 // loop_header
          %s224 = sphi 0, %s228
          %p225 = scmp.ge.s32.totalorder %s224, 27
          %v229 = vphi 0.0, %v936
          %v230 = vphi 0.0, %v937
        $region35: #{tpu_custom_call.1} parent=31 // loop_header_branch
          %227 = sbr.rel (%p225) target = $region39
        $region36: #{tpu_custom_call.1} parent=31 // loop_body
          %s231 = smul.u32 %s224, 2
          %s232 = smul.addr %s231, 4
          %s233 = scalar_lea.vmem %s212, %s232
          %v234 = vld [vmem:[%s233] sm:$0x77]
          %v236 = vlaneseq
          %v237 = vshrl.u32 %v236, 7
          %v238 = vsub.s32 0, %v237
          %v239 = vrot.slane %v234, %v238
          %v240 = vlaneseq
          %v241 = vshrl.u32 %v240, 7
          %v242 = vsub.s32 4, %v241
          %v243 = vrot.slane %v234, %v242
          %v246 = vlaneseq
          %v247 = vshrl.u32 %v246, 7
          %v248 = vsub.s32 0, %v247
          %v249 = vrot.slane %v239, %v248
          %v250 = vlaneseq
          %v251 = vshrl.u32 %v250, 7
          %v252 = vsub.s32 0, %v251
          %v253 = vrot.slane %v243, %v252
          %v254 = vsub.f32 %v222, %v249
          %v255 = vsub.f32 %v222, %v253
          %v256 = vand.u32 2147483647, %v254
          %v257 = vand.u32 2147483647, %v255
          %v258 = vsub.f32 1.0, %v256
          %v259 = vsub.f32 1.0, %v257
          %v260 = vmax.f32 %v258, 0.0
          %v261 = vmax.f32 %v259, 0.0
          %v262 = vlaneseq
          %v263 = vshrl.u32 %v262, 7
          %v264 = vsub.s32 1, %v263
          %v265 = vrot.slane %v234, %v264
          %v266 = vlaneseq
          %v267 = vshrl.u32 %v266, 7
          %v268 = vsub.s32 5, %v267
          %v269 = vrot.slane %v234, %v268
          %v272 = vlaneseq
          %v273 = vshrl.u32 %v272, 7
          %v274 = vsub.s32 1, %v273
          %v275 = vrot.slane %v265, %v274
          %v276 = vlaneseq
          %v277 = vshrl.u32 %v276, 7
          %v278 = vsub.s32 1, %v277
          %v279 = vrot.slane %v269, %v278
          %v280 = vsub.f32 %v222, %v275
          %v281 = vsub.f32 %v222, %v279
          %v282 = vand.u32 2147483647, %v280
          %v283 = vand.u32 2147483647, %v281
          %v284 = vsub.f32 1.0, %v282
          %v285 = vsub.f32 1.0, %v283
          %v286 = vmax.f32 %v284, 0.0
          %v287 = vmax.f32 %v285, 0.0
          %v288 = vlaneseq
          %v289 = vshrl.u32 %v288, 7
          %v290 = vsub.s32 2, %v289
          %v291 = vrot.slane %v234, %v290
          %v292 = vlaneseq
          %v293 = vshrl.u32 %v292, 7
          %v294 = vsub.s32 6, %v293
          %v295 = vrot.slane %v234, %v294
          %v298 = vlaneseq
          %v299 = vshrl.u32 %v298, 7
          %v300 = vsub.s32 2, %v299
          %v301 = vrot.slane %v291, %v300
          %v302 = vlaneseq
          %v303 = vshrl.u32 %v302, 7
          %v304 = vsub.s32 2, %v303
          %v305 = vrot.slane %v295, %v304
          %v306 = vsub.f32 %v222, %v301
          %v307 = vsub.f32 %v222, %v305
          %v308 = vand.u32 2147483647, %v306
          %v309 = vand.u32 2147483647, %v307
          %v310 = vsub.f32 1.0, %v308
          %v311 = vsub.f32 1.0, %v309
          %v312 = vmax.f32 %v310, 0.0
          %v313 = vmax.f32 %v311, 0.0
          %v316 = vcombine.low %v260, %v261
          %v318 = vunpack.c.l.s4 1966171168
          %v319 = vunpack.c.0.s8 %v318
          %v320 = vlaneseq
          %v321 = vshrl.u32 %v320, 7
          %v322 = vsub.s32 %v319, %v321
          %v323 = vrot.slane %v316, %v322
          %v324 = vcombine.high %v323, %v323
          %v326 = vunpack.c.l.s4 1966171168
          %v327 = vunpack.c.0.s8 %v326
          %v328 = vlaneseq
          %v329 = vshrl.u32 %v328, 7
          %v330 = vsub.s32 %v327, %v329
          %v331 = vrot.slane %v323, %v330
          %v333 = vunpack.c.l.s4 1966171168
          %v334 = vunpack.c.0.s8 %v333
          %v335 = vlaneseq
          %v336 = vshrl.u32 %v335, 7
          %v337 = vsub.s32 %v334, %v336
          %v338 = vrot.slane %v324, %v337
          %v339 = vcombine.high %v331, %v331
          %v340 = vcombine.high %v338, %v338
          %v347 = vcombine.low %v286, %v287
          %v348 = vcombine.high %v286, %v287
          %v350 = vunpack.c.l.s4 1966171168
          %v351 = vunpack.c.0.s8 %v350
          %v352 = vlaneseq
          %v353 = vshrl.u32 %v352, 7
          %v354 = vsub.s32 %v351, %v353
          %v355 = vrot.slane %v347, %v354
          %v357 = vunpack.c.l.s4 1966171168
          %v358 = vunpack.c.0.s8 %v357
          %v359 = vlaneseq
          %v360 = vshrl.u32 %v359, 7
          %v361 = vsub.s32 %v358, %v360
          %v362 = vrot.slane %v348, %v361
          %v363 = vcombine.high %v355, %v355
          %v364 = vcombine.high %v362, %v362
          %v366 = vunpack.c.l.s4 1966171168
          %v367 = vunpack.c.0.s8 %v366
          %v368 = vlaneseq
          %v369 = vshrl.u32 %v368, 7
          %v370 = vsub.s32 %v367, %v369
          %v371 = vrot.slane %v355, %v370
          %v373 = vunpack.c.l.s4 1966171168
          %v374 = vunpack.c.0.s8 %v373
          %v375 = vlaneseq
          %v376 = vshrl.u32 %v375, 7
          %v377 = vsub.s32 %v374, %v376
          %v378 = vrot.slane %v362, %v377
          %v380 = vunpack.c.l.s4 1966171168
          %v381 = vunpack.c.0.s8 %v380
          %v382 = vlaneseq
          %v383 = vshrl.u32 %v382, 7
          %v384 = vsub.s32 %v381, %v383
          %v385 = vrot.slane %v363, %v384
          %v387 = vunpack.c.l.s4 1966171168
          %v388 = vunpack.c.0.s8 %v387
          %v389 = vlaneseq
          %v390 = vshrl.u32 %v389, 7
          %v391 = vsub.s32 %v388, %v390
          %v392 = vrot.slane %v364, %v391
          %v393 = vcombine.high %v371, %v371
          %v394 = vcombine.high %v378, %v378
          %v395 = vcombine.high %v385, %v385
          %v396 = vcombine.high %v392, %v392
          %v405 = vmul.f32 %v331, %v371
          %v406 = vmul.f32 %v331, %v385
          %v407 = vmul.f32 %v331, %v393
          %v408 = vmul.f32 %v331, %v395
          %v409 = vmul.f32 %v331, %v378
          %v410 = vmul.f32 %v331, %v392
          %v411 = vmul.f32 %v331, %v394
          %v412 = vmul.f32 %v331, %v396
          %v413 = vmul.f32 %v338, %v371
          %v414 = vmul.f32 %v338, %v385
          %v415 = vmul.f32 %v338, %v393
          %v416 = vmul.f32 %v338, %v395
          %v417 = vmul.f32 %v338, %v378
          %v418 = vmul.f32 %v338, %v392
          %v419 = vmul.f32 %v338, %v394
          %v420 = vmul.f32 %v338, %v396
          %v421 = vmul.f32 %v339, %v371
          %v422 = vmul.f32 %v339, %v385
          %v423 = vmul.f32 %v339, %v393
          %v424 = vmul.f32 %v339, %v395
          %v425 = vmul.f32 %v339, %v378
          %v426 = vmul.f32 %v339, %v392
          %v427 = vmul.f32 %v339, %v394
          %v428 = vmul.f32 %v339, %v396
          %v429 = vmul.f32 %v340, %v371
          %v430 = vmul.f32 %v340, %v385
          %v431 = vmul.f32 %v340, %v393
          %v432 = vmul.f32 %v340, %v395
          %v433 = vmul.f32 %v340, %v378
          %v434 = vmul.f32 %v340, %v392
          %v435 = vmul.f32 %v340, %v394
          %v436 = vmul.f32 %v340, %v396
          %v469 = vlaneseq
          %v470 = vshrl.u32 %v469, 7
          %v471 = vsub.s32 0, %v470
          %v472 = vrot.slane %v405, %v471
          %v473 = vlaneseq
          %v474 = vshrl.u32 %v473, 7
          %v475 = vsub.s32 1, %v474
          %v476 = vrot.slane %v405, %v475
          %v477 = vlaneseq
          %v478 = vshrl.u32 %v477, 7
          %v479 = vsub.s32 0, %v478
          %v480 = vrot.slane %v406, %v479
          %v481 = vlaneseq
          %v482 = vshrl.u32 %v481, 7
          %v483 = vsub.s32 1, %v482
          %v484 = vrot.slane %v406, %v483
          %v485 = vlaneseq
          %v486 = vshrl.u32 %v485, 7
          %v487 = vsub.s32 0, %v486
          %v488 = vrot.slane %v407, %v487
          %v489 = vlaneseq
          %v490 = vshrl.u32 %v489, 7
          %v491 = vsub.s32 1, %v490
          %v492 = vrot.slane %v407, %v491
          %v493 = vlaneseq
          %v494 = vshrl.u32 %v493, 7
          %v495 = vsub.s32 0, %v494
          %v496 = vrot.slane %v408, %v495
          %v497 = vlaneseq
          %v498 = vshrl.u32 %v497, 7
          %v499 = vsub.s32 1, %v498
          %v500 = vrot.slane %v408, %v499
          %v501 = vlaneseq
          %v502 = vshrl.u32 %v501, 7
          %v503 = vsub.s32 0, %v502
          %v504 = vrot.slane %v409, %v503
          %v505 = vlaneseq
          %v506 = vshrl.u32 %v505, 7
          %v507 = vsub.s32 1, %v506
          %v508 = vrot.slane %v409, %v507
          %v509 = vlaneseq
          %v510 = vshrl.u32 %v509, 7
          %v511 = vsub.s32 0, %v510
          %v512 = vrot.slane %v410, %v511
          %v513 = vlaneseq
          %v514 = vshrl.u32 %v513, 7
          %v515 = vsub.s32 1, %v514
          %v516 = vrot.slane %v410, %v515
          %v517 = vlaneseq
          %v518 = vshrl.u32 %v517, 7
          %v519 = vsub.s32 0, %v518
          %v520 = vrot.slane %v411, %v519
          %v521 = vlaneseq
          %v522 = vshrl.u32 %v521, 7
          %v523 = vsub.s32 1, %v522
          %v524 = vrot.slane %v411, %v523
          %v525 = vlaneseq
          %v526 = vshrl.u32 %v525, 7
          %v527 = vsub.s32 0, %v526
          %v528 = vrot.slane %v412, %v527
          %v529 = vlaneseq
          %v530 = vshrl.u32 %v529, 7
          %v531 = vsub.s32 1, %v530
          %v532 = vrot.slane %v412, %v531
          %v533 = vlaneseq
          %v534 = vshrl.u32 %v533, 7
          %v535 = vsub.s32 0, %v534
          %v536 = vrot.slane %v413, %v535
          %v537 = vlaneseq
          %v538 = vshrl.u32 %v537, 7
          %v539 = vsub.s32 1, %v538
          %v540 = vrot.slane %v413, %v539
          %v541 = vlaneseq
          %v542 = vshrl.u32 %v541, 7
          %v543 = vsub.s32 0, %v542
          %v544 = vrot.slane %v414, %v543
          %v545 = vlaneseq
          %v546 = vshrl.u32 %v545, 7
          %v547 = vsub.s32 1, %v546
          %v548 = vrot.slane %v414, %v547
          %v549 = vlaneseq
          %v550 = vshrl.u32 %v549, 7
          %v551 = vsub.s32 0, %v550
          %v552 = vrot.slane %v415, %v551
          %v553 = vlaneseq
          %v554 = vshrl.u32 %v553, 7
          %v555 = vsub.s32 1, %v554
          %v556 = vrot.slane %v415, %v555
          %v557 = vlaneseq
          %v558 = vshrl.u32 %v557, 7
          %v559 = vsub.s32 0, %v558
          %v560 = vrot.slane %v416, %v559
          %v561 = vlaneseq
          %v562 = vshrl.u32 %v561, 7
          %v563 = vsub.s32 1, %v562
          %v564 = vrot.slane %v416, %v563
          %v565 = vlaneseq
          %v566 = vshrl.u32 %v565, 7
          %v567 = vsub.s32 0, %v566
          %v568 = vrot.slane %v417, %v567
          %v569 = vlaneseq
          %v570 = vshrl.u32 %v569, 7
          %v571 = vsub.s32 1, %v570
          %v572 = vrot.slane %v417, %v571
          %v573 = vlaneseq
          %v574 = vshrl.u32 %v573, 7
          %v575 = vsub.s32 0, %v574
          %v576 = vrot.slane %v418, %v575
          %v577 = vlaneseq
          %v578 = vshrl.u32 %v577, 7
          %v579 = vsub.s32 1, %v578
          %v580 = vrot.slane %v418, %v579
          %v581 = vlaneseq
          %v582 = vshrl.u32 %v581, 7
          %v583 = vsub.s32 0, %v582
          %v584 = vrot.slane %v419, %v583
          %v585 = vlaneseq
          %v586 = vshrl.u32 %v585, 7
          %v587 = vsub.s32 1, %v586
          %v588 = vrot.slane %v419, %v587
          %v589 = vlaneseq
          %v590 = vshrl.u32 %v589, 7
          %v591 = vsub.s32 0, %v590
          %v592 = vrot.slane %v420, %v591
          %v593 = vlaneseq
          %v594 = vshrl.u32 %v593, 7
          %v595 = vsub.s32 1, %v594
          %v596 = vrot.slane %v420, %v595
          %v597 = vlaneseq
          %v598 = vshrl.u32 %v597, 7
          %v599 = vsub.s32 0, %v598
          %v600 = vrot.slane %v421, %v599
          %v601 = vlaneseq
          %v602 = vshrl.u32 %v601, 7
          %v603 = vsub.s32 1, %v602
          %v604 = vrot.slane %v421, %v603
          %v605 = vlaneseq
          %v606 = vshrl.u32 %v605, 7
          %v607 = vsub.s32 0, %v606
          %v608 = vrot.slane %v422, %v607
          %v609 = vlaneseq
          %v610 = vshrl.u32 %v609, 7
          %v611 = vsub.s32 1, %v610
          %v612 = vrot.slane %v422, %v611
          %v613 = vlaneseq
          %v614 = vshrl.u32 %v613, 7
          %v615 = vsub.s32 0, %v614
          %v616 = vrot.slane %v423, %v615
          %v617 = vlaneseq
          %v618 = vshrl.u32 %v617, 7
          %v619 = vsub.s32 1, %v618
          %v620 = vrot.slane %v423, %v619
          %v621 = vlaneseq
          %v622 = vshrl.u32 %v621, 7
          %v623 = vsub.s32 0, %v622
          %v624 = vrot.slane %v424, %v623
          %v625 = vlaneseq
          %v626 = vshrl.u32 %v625, 7
          %v627 = vsub.s32 1, %v626
          %v628 = vrot.slane %v424, %v627
          %v629 = vlaneseq
          %v630 = vshrl.u32 %v629, 7
          %v631 = vsub.s32 0, %v630
          %v632 = vrot.slane %v425, %v631
          %v633 = vlaneseq
          %v634 = vshrl.u32 %v633, 7
          %v635 = vsub.s32 1, %v634
          %v636 = vrot.slane %v425, %v635
          %v637 = vlaneseq
          %v638 = vshrl.u32 %v637, 7
          %v639 = vsub.s32 0, %v638
          %v640 = vrot.slane %v426, %v639
          %v641 = vlaneseq
          %v642 = vshrl.u32 %v641, 7
          %v643 = vsub.s32 1, %v642
          %v644 = vrot.slane %v426, %v643
          %v645 = vlaneseq
          %v646 = vshrl.u32 %v645, 7
          %v647 = vsub.s32 0, %v646
          %v648 = vrot.slane %v427, %v647
          %v649 = vlaneseq
          %v650 = vshrl.u32 %v649, 7
          %v651 = vsub.s32 1, %v650
          %v652 = vrot.slane %v427, %v651
          %v653 = vlaneseq
          %v654 = vshrl.u32 %v653, 7
          %v655 = vsub.s32 0, %v654
          %v656 = vrot.slane %v428, %v655
          %v657 = vlaneseq
          %v658 = vshrl.u32 %v657, 7
          %v659 = vsub.s32 1, %v658
          %v660 = vrot.slane %v428, %v659
          %v661 = vlaneseq
          %v662 = vshrl.u32 %v661, 7
          %v663 = vsub.s32 0, %v662
          %v664 = vrot.slane %v429, %v663
          %v665 = vlaneseq
          %v666 = vshrl.u32 %v665, 7
          %v667 = vsub.s32 1, %v666
          %v668 = vrot.slane %v429, %v667
          %v669 = vlaneseq
          %v670 = vshrl.u32 %v669, 7
          %v671 = vsub.s32 0, %v670
          %v672 = vrot.slane %v430, %v671
          %v673 = vlaneseq
          %v674 = vshrl.u32 %v673, 7
          %v675 = vsub.s32 1, %v674
          %v676 = vrot.slane %v430, %v675
          %v677 = vlaneseq
          %v678 = vshrl.u32 %v677, 7
          %v679 = vsub.s32 0, %v678
          %v680 = vrot.slane %v431, %v679
          %v681 = vlaneseq
          %v682 = vshrl.u32 %v681, 7
          %v683 = vsub.s32 1, %v682
          %v684 = vrot.slane %v431, %v683
          %v685 = vlaneseq
          %v686 = vshrl.u32 %v685, 7
          %v687 = vsub.s32 0, %v686
          %v688 = vrot.slane %v432, %v687
          %v689 = vlaneseq
          %v690 = vshrl.u32 %v689, 7
          %v691 = vsub.s32 1, %v690
          %v692 = vrot.slane %v432, %v691
          %v693 = vlaneseq
          %v694 = vshrl.u32 %v693, 7
          %v695 = vsub.s32 0, %v694
          %v696 = vrot.slane %v433, %v695
          %v697 = vlaneseq
          %v698 = vshrl.u32 %v697, 7
          %v699 = vsub.s32 1, %v698
          %v700 = vrot.slane %v433, %v699
          %v701 = vlaneseq
          %v702 = vshrl.u32 %v701, 7
          %v703 = vsub.s32 0, %v702
          %v704 = vrot.slane %v434, %v703
          %v705 = vlaneseq
          %v706 = vshrl.u32 %v705, 7
          %v707 = vsub.s32 1, %v706
          %v708 = vrot.slane %v434, %v707
          %v709 = vlaneseq
          %v710 = vshrl.u32 %v709, 7
          %v711 = vsub.s32 0, %v710
          %v712 = vrot.slane %v435, %v711
          %v713 = vlaneseq
          %v714 = vshrl.u32 %v713, 7
          %v715 = vsub.s32 1, %v714
          %v716 = vrot.slane %v435, %v715
          %v717 = vlaneseq
          %v718 = vshrl.u32 %v717, 7
          %v719 = vsub.s32 0, %v718
          %v720 = vrot.slane %v436, %v719
          %v721 = vlaneseq
          %v722 = vshrl.u32 %v721, 7
          %v723 = vsub.s32 1, %v722
          %v724 = vrot.slane %v436, %v723
          %v789 = vmul.f32 %v472, %v312
          %v790 = vmul.f32 %v476, %v313
          %v791 = vmul.f32 %v480, %v312
          %v792 = vmul.f32 %v484, %v313
          %v793 = vmul.f32 %v488, %v312
          %v794 = vmul.f32 %v492, %v313
          %v795 = vmul.f32 %v496, %v312
          %v796 = vmul.f32 %v500, %v313
          %v797 = vmul.f32 %v504, %v312
          %v798 = vmul.f32 %v508, %v313
          %v799 = vmul.f32 %v512, %v312
          %v800 = vmul.f32 %v516, %v313
          %v801 = vmul.f32 %v520, %v312
          %v802 = vmul.f32 %v524, %v313
          %v803 = vmul.f32 %v528, %v312
          %v804 = vmul.f32 %v532, %v313
          %v805 = vmul.f32 %v536, %v312
          %v806 = vmul.f32 %v540, %v313
          %v807 = vmul.f32 %v544, %v312
          %v808 = vmul.f32 %v548, %v313
          %v809 = vmul.f32 %v552, %v312
          %v810 = vmul.f32 %v556, %v313
          %v811 = vmul.f32 %v560, %v312
          %v812 = vmul.f32 %v564, %v313
          %v813 = vmul.f32 %v568, %v312
          %v814 = vmul.f32 %v572, %v313
          %v815 = vmul.f32 %v576, %v312
          %v816 = vmul.f32 %v580, %v313
          %v817 = vmul.f32 %v584, %v312
          %v818 = vmul.f32 %v588, %v313
          %v819 = vmul.f32 %v592, %v312
          %v820 = vmul.f32 %v596, %v313
          %v821 = vmul.f32 %v600, %v312
          %v822 = vmul.f32 %v604, %v313
          %v823 = vmul.f32 %v608, %v312
          %v824 = vmul.f32 %v612, %v313
          %v825 = vmul.f32 %v616, %v312
          %v826 = vmul.f32 %v620, %v313
          %v827 = vmul.f32 %v624, %v312
          %v828 = vmul.f32 %v628, %v313
          %v829 = vmul.f32 %v632, %v312
          %v830 = vmul.f32 %v636, %v313
          %v831 = vmul.f32 %v640, %v312
          %v832 = vmul.f32 %v644, %v313
          %v833 = vmul.f32 %v648, %v312
          %v834 = vmul.f32 %v652, %v313
          %v835 = vmul.f32 %v656, %v312
          %v836 = vmul.f32 %v660, %v313
          %v837 = vmul.f32 %v664, %v312
          %v838 = vmul.f32 %v668, %v313
          %v839 = vmul.f32 %v672, %v312
          %v840 = vmul.f32 %v676, %v313
          %v841 = vmul.f32 %v680, %v312
          %v842 = vmul.f32 %v684, %v313
          %v843 = vmul.f32 %v688, %v312
          %v844 = vmul.f32 %v692, %v313
          %v845 = vmul.f32 %v696, %v312
          %v846 = vmul.f32 %v700, %v313
          %v847 = vmul.f32 %v704, %v312
          %v848 = vmul.f32 %v708, %v313
          %v849 = vmul.f32 %v712, %v312
          %v850 = vmul.f32 %v716, %v313
          %v851 = vmul.f32 %v720, %v312
          %v852 = vmul.f32 %v724, %v313
          %s853 = smul.addr %s231, 4
          %s854 = scalar_lea.vmem %s218, %s853
          %v855 = vld [vmem:[%s854] sm:$0xff]
          %v856 = vpack.c.bf16 %v791, %v789
          %v857 = vpack.c.bf16 %v792, %v790
          %v858 = vpack.c.bf16 %v795, %v793
          %v859 = vpack.c.bf16 %v796, %v794
          %v860 = vpack.c.bf16 %v799, %v797
          %v861 = vpack.c.bf16 %v800, %v798
          %v862 = vpack.c.bf16 %v803, %v801
          %v863 = vpack.c.bf16 %v804, %v802
          %v864 = vpack.c.bf16 %v807, %v805
          %v865 = vpack.c.bf16 %v808, %v806
          %v866 = vpack.c.bf16 %v811, %v809
          %v867 = vpack.c.bf16 %v812, %v810
          %v868 = vpack.c.bf16 %v815, %v813
          %v869 = vpack.c.bf16 %v816, %v814
          %v870 = vpack.c.bf16 %v819, %v817
          %v871 = vpack.c.bf16 %v820, %v818
          %v872 = vpack.c.bf16 %v823, %v821
          %v873 = vpack.c.bf16 %v824, %v822
          %v874 = vpack.c.bf16 %v827, %v825
          %v875 = vpack.c.bf16 %v828, %v826
          %v876 = vpack.c.bf16 %v831, %v829
          %v877 = vpack.c.bf16 %v832, %v830
          %v878 = vpack.c.bf16 %v835, %v833
          %v879 = vpack.c.bf16 %v836, %v834
          %v880 = vpack.c.bf16 %v839, %v837
          %v881 = vpack.c.bf16 %v840, %v838
          %v882 = vpack.c.bf16 %v843, %v841
          %v883 = vpack.c.bf16 %v844, %v842
          %v884 = vpack.c.bf16 %v847, %v845
          %v885 = vpack.c.bf16 %v848, %v846
          %v886 = vpack.c.bf16 %v851, %v849
          %v887 = vpack.c.bf16 %v852, %v850
          %v889 = vunpack.c.l.b16 %v855
          %v890 = vunpack.c.h.b16 %v855
          %v891 = vpack.c.b16 %v889, %v889
          %v892 = vpack.c.b16 %v890, %v890
          %895 = vmatprep.subr.bf16.mxu0 %v857
          %896 = vmatpush1.bf16.msra.mxu0 %v856
          %897 = vmatprep.subr.bf16.mxu0 %v859
          %898 = vmatpush1.bf16.msra.mxu0 %v858
          %899 = vmatprep.subr.bf16.mxu0 %v861
          %900 = vmatpush1.bf16.msra.mxu0 %v860
          %901 = vmatprep.subr.bf16.mxu0 %v863
          %902 = vmatpush1.bf16.msra.mxu0 %v862
          %903 = vmatprep.subr.bf16.mxu0 %v865
          %904 = vmatpush1.bf16.msra.mxu0 %v864
          %905 = vmatprep.subr.bf16.mxu0 %v867
          %906 = vmatpush1.bf16.msra.mxu0 %v866
          %907 = vmatprep.subr.bf16.mxu0 %v869
          %908 = vmatpush1.bf16.msra.mxu0 %v868
          %909 = vmatprep.subr.bf16.mxu0 %v871
          %910 = vmatpush1.bf16.msra.mxu0 %v870
          %911 = vmatprep.subr.bf16.mxu0 %v873
          %912 = vmatpush1.bf16.msra.mxu0 %v872
          %913 = vmatprep.subr.bf16.mxu0 %v875
          %914 = vmatpush1.bf16.msra.mxu0 %v874
          %915 = vmatprep.subr.bf16.mxu0 %v877
          %916 = vmatpush1.bf16.msra.mxu0 %v876
          %917 = vmatprep.subr.bf16.mxu0 %v879
          %918 = vmatpush1.bf16.msra.mxu0 %v878
          %919 = vmatprep.subr.bf16.mxu0 %v881
          %920 = vmatpush1.bf16.msra.mxu0 %v880
          %921 = vmatprep.subr.bf16.mxu0 %v883
          %922 = vmatpush1.bf16.msra.mxu0 %v882
          %923 = vmatprep.subr.bf16.mxu0 %v885
          %924 = vmatpush1.bf16.msra.mxu0 %v884
          %925 = vmatprep.subr.bf16.mxu0 %v887
          %926 = vmatpush1.bf16.msra.mxu0 %v886
          %927 = vmatprep.mubr.bf16.mxu0 %v892
          %928 = vmatmul.mubr.bf16.gmra.mrb[0].mxu0 %v891
          %v929 = vpop.f32.mrb[0].mxu0
          %v930 = vadd.f32 0.0, %v929
          %v931 = vpop.f32.mrb[0].mxu0
          %v932 = vadd.f32 0.0, %v931
          %v933 = vpop.f32.mrb[0].mxu0
          %v934 = vpop.f32.mrb[0].mxu0
          %935 = vdwg.mxu0
          %v936 = vadd.f32 %v229, %v930
          %v937 = vadd.f32 %v230, %v932
        $region37: #{tpu_custom_call.1} parent=31 // loop_footer
          %s228 = sadd.s32 1, %s224
        $region38: #{tpu_custom_call.1} parent=31 // loop_footer_branch
          %223 = sbr.rel target = $region34
        $region39: #{tpu_custom_call.1} parent=31 // loop_exit
          _
        %v938 = vld [vmem:[%s2] sm:$0xff]
        %940 = vset.pattern.permute.xlu0 0
        %941 = vperm.xlu0 %940, %v938
        %v942 = vpop.permute.xlu0 %941
        %v944 = vadd.f32 %v229, %v942
        %v945 = vadd.f32 %v230, %v942
        %946 = vst [vmem:[%s203] sm:$0xff] %v944
        %947 = vst [vmem:[%s203 + $0x8] sm:$0xff] %v945
        %s948 = sand.u32 %s114, 1
        %s949 = scalar_lea.sflag [#allocation3], %s948
        %s950 = sand.u32 %s114, 1
        %s951 = smul.addr %s950, 16
        %s952 = scalar_lea.vmem [#allocation2], %s951
        // Predicated region
        $region40: #{tpu_custom_call.1} parent=31 // pred_check
          %p953 = pneg %p124
        $region41: #{tpu_custom_call.1} parent=31 // pred_check_branch
          %955 = sbr.rel (%p953) target = $region43
        $region42: #{tpu_custom_call.1} parent=31 // pred_region
          %s956 = smul.u32 2, %s22
          %s958 = ssub.s32 256, 256
          %959 = vsyncadd %s949, %s958
          %s960 = smul.addr %s21, 2
          %s961 = sadd.s32 %s956, %s960
          %s962 = smul.addr %s961, 128
          %s963 = scalar_lea.hbm %s3, %s962
          %s965 = sshll.u32 %s952, 4
          %s966 = int_to_ptr.vmem [resolvable:$true] %s965
          %968 = dma.vmem_to_hbm [thread:$0]  %s966, 256, %s963, %s949
        $region43: #{tpu_custom_call.1} parent=31 // pred_fallthru
          _
      $region32: #{tpu_custom_call.1} parent=5 // pred_fallthru
        _
      %p969 = scmp.le.s32.totalorder 2, %s12
      // Predicated region
      $region44: #{tpu_custom_call.1} parent=5 // pred_check
        %p970 = pneg %p969
      $region45: #{tpu_custom_call.1} parent=5 // pred_check_branch
        %972 = sbr.rel (%p970) target = $region47
      $region46: #{tpu_custom_call.1} parent=5 // pred_region
        %s973 = ssub.s32 %s12, 2
        // Predicated region
        $region48: #{tpu_custom_call.1} parent=46 // pred_check
          %p974 = pneg %p130
        $region49: #{tpu_custom_call.1} parent=46 // pred_check_branch
          %976 = sbr.rel (%p974) target = $region51
        $region50: #{tpu_custom_call.1} parent=46 // pred_region
          %s977 = sand.u32 %s115, 1
          %s978 = scalar_lea.sflag [#allocation3], %s977
          %s979 = sand.u32 %s115, 1
          %s980 = smul.addr %s979, 16
          %s981 = scalar_lea.vmem [#allocation2], %s980
          %982 = dma.done %s978, 256
        $region51: #{tpu_custom_call.1} parent=46 // pred_fallthru
          _
      $region47: #{tpu_custom_call.1} parent=5 // pred_fallthru
        _
    $region6: #{tpu_custom_call.1} parent=1 // loop_footer
      %s16 = sadd.s32 1, %s12
    $region7: #{tpu_custom_call.1} parent=1 // loop_footer_branch
      %11 = sbr.rel target = $region3
    $region8: #{tpu_custom_call.1} parent=1 // loop_exit
      _
    %983 = vsyncpa [#allocation3], 1
    %s984 = scalar_lea.sflag [#allocation3], 1
    %985 = vsyncpa %s984, 1

</llo_original>
